<compile_context>
chip_gen: v5e
topology: v5e:2x2
jax: 0.10.0
libtpu: 0.0.40
codegen_flags: <defaults>
</compile_context>

<pallas_src>
import functools

import jax
import jax.numpy as jnp
from jax.experimental import pallas as pl
from jax.experimental.pallas import tpu as pltpu


def _round_up(x, m):
    return ((x + m - 1) // m) * m


def gin_kernel(eps_ref, adj_ref, feat_ref, feat_self_ref,
               w1_ref, b1_ref, w2_ref, b2_ref, out_ref, acc_ref,
               *, feat_resident, tk):
    k = pl.program_id(1)

    # Zero the aggregation accumulator at the start of each row tile.
    @pl.when(k == 0)
    def _():
        acc_ref[...] = jnp.zeros_like(acc_ref)

    # Neighbor aggregation: int8 (0/1) adjacency is upcast to the compute
    # dtype (bf16) immediately before the dot; accumulate in f32 on the MXU.
    a = adj_ref[...].astype(feat_ref.dtype)
    if feat_resident:
        # feat is fully resident in VMEM; slice the current K block.
        f = feat_ref[pl.ds(pl.multiple_of(k * tk, tk), tk), :]
    else:
        f = feat_ref[...]
    acc_ref[...] += jnp.dot(a, f, preferred_element_type=jnp.float32)

    # On the last K step: GIN combine + apply_func MLP + lane-dense store.
    @pl.when(k == pl.num_programs(1) - 1)
    def _():
        eps = eps_ref[0, 0]
        agg = acc_ref[...] + (1.0 + eps) * feat_self_ref[...].astype(jnp.float32)
        # Epilogue matmuls in bf16 with f32 accumulation (weights resident bf16).
        h = jnp.dot(agg.astype(w1_ref.dtype), w1_ref[...],
                    preferred_element_type=jnp.float32)
        h = h + b1_ref[...].astype(jnp.float32)
        h = jnp.maximum(h, 0.0)
        out = jnp.dot(h.astype(w2_ref.dtype), w2_ref[...],
                      preferred_element_type=jnp.float32)
        out = out + b2_ref[...].astype(jnp.float32)
        out_ref[...] = out.astype(out_ref.dtype)


def gin_conv(adj, feat, eps, w1, b1, w2, b2, *,
             tn=512, tk=2048,
             adj_dtype=jnp.int8,
             compute_dtype=jnp.bfloat16,
             max_resident_feat_bytes=8 * 1024 * 1024,
             feat_resident=None):
    """GINConv forward. adj: (N,N) dense 0/1 adjacency (or pre-padded int8),
    feat: (N,D). apply_func = Linear(D->H) -> ReLU -> Linear(H->Dout).

    adj_dtype=int8 / compute_dtype=bf16 are exact for 0/1 adjacency; weighted
    graphs needing full precision should pass adj_dtype/compute_dtype=f32.
    """
    N, D = feat.shape
    H = w1.shape[1]
    Dout = w2.shape[1]
    assert w1.shape == (D, H) and w2.shape == (H, Dout)

    # ---- Tile sizes (MXU / lane aligned) ----------------------------------
    Nr8 = _round_up(N, 8)
    tn = _round_up(min(tn, Nr8), 32)          # 32-aligned (int8 sublane packing)
    # v7x megacore: keep >= 2 tiles on the "parallel" row axis when possible.
    if _round_up(N, tn) // tn < 2 and Nr8 >= 64:
        tn = _round_up((Nr8 + 1) // 2, 32)
    tk = _round_up(min(tk, _round_up(N, 128)), 128)
    Nr = _round_up(N, tn)                     # padded row count
    Nc = _round_up(N, tk)                     # padded neighbor count
    Dp = _round_up(D, 128)                    # lane-dense feature width
    Hp = _round_up(H, 128)                    # lane-dense hidden width
    Op = _round_up(Dout, 128)                 # lane-dense output width

    cdt = jnp.dtype(compute_dtype)
    adt = jnp.dtype(adj_dtype)

    # Keep feat resident in VMEM when it fits (removes (Nr/tn)x re-reads).
    feat_bytes = Nc * Dp * cdt.itemsize
    if feat_resident is None:
        feat_resident = feat_bytes <= max_resident_feat_bytes

    # ---- Adjacency: pad/cast only if caller has not pre-prepared it -------
    if adj.shape == (Nr, Nc) and adj.dtype == adt:
        adj_p = adj                                       # zero-copy fast path
    else:
        assert adj.shape == (N, N)
        a = adj.astype(adj_dtype)
        if (Nr, Nc) != (N, N):
            a = jnp.zeros((Nr, Nc), adj_dtype).at[:N, :N].set(a)
        adj_p = a

    # ---- Other operands (small; padded lane-dense, weights in bf16) -------
    feat_k = jnp.zeros((Nc, Dp), compute_dtype).at[:N, :D].set(
        feat.astype(compute_dtype))                       # aggregation RHS
    feat_s = jnp.zeros((Nr, Dp), feat.dtype).at[:N, :D].set(feat)   # self term
    w1_p = jnp.zeros((Dp, Hp), compute_dtype).at[:D, :H].set(w1.astype(compute_dtype))
    b1_p = jnp.zeros((1, Hp), compute_dtype).at[:, :H].set(
        b1.astype(compute_dtype).reshape(1, H))
    w2_p = jnp.zeros((Hp, Op), compute_dtype).at[:H, :Dout].set(
        w2.astype(compute_dtype))
    b2_p = jnp.zeros((1, Op), compute_dtype).at[:, :Dout].set(
        b2.astype(compute_dtype).reshape(1, Dout))
    eps_arr = jnp.asarray(eps, jnp.float32).reshape(1, 1)

    if feat_resident:
        feat_spec = pl.BlockSpec((Nc, Dp), lambda i, k: (0, 0))   # DMA'd once
    else:
        feat_spec = pl.BlockSpec((tk, Dp), lambda i, k: (k, 0))   # streamed

    out_itemsize = jnp.dtype(feat.dtype).itemsize
    feat_reads = 1 if feat_resident else (Nr // tn)
    cost = pl.CostEstimate(
        flops=int(2 * Nr * Nc * Dp + 2 * Nr * Dp * Hp + 2 * Nr * Hp * Op),
        transcendentals=0,
        bytes_accessed=int(
            Nr * Nc * adt.itemsize                        # adjacency (dominant)
            + feat_reads * Nc * Dp * cdt.itemsize         # aggregation RHS
            + Nr * Dp * out_itemsize                      # self features
            + (Dp * Hp + Hp * Op + Hp + Op) * cdt.itemsize
            + Nr * Op * out_itemsize),                    # output
    )

    kernel = functools.partial(gin_kernel, feat_resident=feat_resident, tk=tk)

    out_p = pl.pallas_call(
        kernel,
        out_shape=jax.ShapeDtypeStruct((Nr, Op), feat.dtype),
        grid_spec=pltpu.PrefetchScalarGridSpec(
            num_scalar_prefetch=0,
            grid=(Nr // tn, Nc // tk),
            in_specs=[
                pl.BlockSpec(memory_space=pltpu.SMEM),           # eps (1,1)
                pl.BlockSpec((tn, tk), lambda i, k: (i, k)),     # adj tile (int8)
                feat_spec,                                       # aggregation RHS
                pl.BlockSpec((tn, Dp), lambda i, k: (i, 0)),     # self features
                pl.BlockSpec((Dp, Hp), lambda i, k: (0, 0)),     # W1 (resident)
                pl.BlockSpec((1, Hp), lambda i, k: (0, 0)),      # b1
                pl.BlockSpec((Hp, Op), lambda i, k: (0, 0)),     # W2 (resident)
                pl.BlockSpec((1, Op), lambda i, k: (0, 0)),      # b2
            ],
            out_specs=pl.BlockSpec((tn, Op), lambda i, k: (i, 0)),
            scratch_shapes=[pltpu.VMEM((tn, Dp), jnp.float32)],  # f32 accumulator
        ),
        compiler_params=pltpu.CompilerParams(
            dimension_semantics=("parallel", "arbitrary"),
            vmem_limit_bytes=48 * 1024 * 1024,   # fits v7x 64 MiB with headroom
        ),
        cost_estimate=cost,
    )(eps_arr, adj_p, feat_k, feat_s, w1_p, b1_p, w2_p, b2_p)

    return out_p[:N, :Dout]


def gin_conv_ref(adj, feat, eps, w1, b1, w2, b2):
    neigh = adj @ feat
    agg = (1.0 + eps) * feat + neigh
    h = jnp.maximum(agg @ w1 + b1, 0.0)
    return h @ w2 + b2


if __name__ == "__main__":
    # Small deterministic problem: N=256 nodes, D=32 features, hidden=64.
    N, D, H = 256, 32, 64
    key = jax.random.PRNGKey(0)
    k_adj, k_feat, k_w1, k_b1, k_w2, k_b2 = jax.random.split(key, 6)

    # Random sparse-ish 0/1 adjacency (dense representation of spmm input).
    adj = (jax.random.uniform(k_adj, (N, N)) < 0.1).astype(jnp.float32)
    feat = jax.random.normal(k_feat, (N, D), dtype=jnp.float32)

    # apply_func = Linear(D->H) -> ReLU -> Linear(H->D), deterministic init.
    w1 = jax.random.normal(k_w1, (D, H), dtype=jnp.float32) * 0.1
    b1 = jax.random.normal(k_b1, (H,), dtype=jnp.float32) * 0.01
    w2 = jax.random.normal(k_w2, (H, D), dtype=jnp.float32) * 0.1
    b2 = jax.random.normal(k_b2, (D,), dtype=jnp.float32) * 0.01

    eps = 0.0  # init_eps=0, learn_eps=False (buffer, not trained)

    # Hoist the adjacency cast out of the per-call path: pre-cast to int8 once
    # (0/1 edges are exact); with tn/tk dividing N no pad copy is made either.
    adj_i8 = adj.astype(jnp.int8)

    ref = gin_conv_ref(adj, feat, eps, w1, b1, w2, b2)

    def check(out, name):
        out = jax.block_until_ready(out)
        rel = jnp.linalg.norm(out - ref) / jnp.linalg.norm(ref)
        # Tolerance covers the intentional bf16 operand truncation (feat,
        # agg/h, weights) with f32 accumulation; real bugs give O(1) errors.
        ok = bool(jnp.allclose(out, ref, atol=5e-2, rtol=5e-2)) and float(rel) < 1e-2
        if not ok:
            max_err = jnp.max(jnp.abs(out - ref))
            raise AssertionError(
                f"{name}: Pallas GINConv mismatch vs reference "
                f"(rel frob err {float(rel):.3e}, max abs err {float(max_err):.3e})")

    # Small tiles so the (2, 2) grid exercises both the parallel row axis and
    # the K-accumulation axis; production defaults are tn=512, tk=2048.
    check(gin_conv(adj_i8, feat, eps, w1, b1, w2, b2, tn=128, tk=128),
          "resident-feat")
    # Also exercise the streamed-feat fallback used when feat exceeds VMEM.
    check(gin_conv(adj_i8, feat, eps, w1, b1, w2, b2, tn=128, tk=128,
                   feat_resident=False),
          "streamed-feat")

    print("KERNEL_OK")
</pallas_src>

<mosaic_0001>
module attributes {stable_mosaic.version = 11 : i64} {
  func.func @gin_kernel(%arg0: i32, %arg1: i32, %arg2: memref<1x1xf32, #tpu.memory_space<smem>>, %arg3: memref<128x128xi8, #tpu.memory_space<vmem>>, %arg4: memref<256x128xbf16, #tpu.memory_space<vmem>>, %arg5: memref<128x128xf32, #tpu.memory_space<vmem>>, %arg6: memref<128x128xbf16, #tpu.memory_space<vmem>>, %arg7: memref<1x128xbf16, #tpu.memory_space<vmem>>, %arg8: memref<128x128xbf16, #tpu.memory_space<vmem>>, %arg9: memref<1x128xbf16, #tpu.memory_space<vmem>>, %arg10: memref<128x128xf32, #tpu.memory_space<vmem>>, %arg11: memref<128x128xf32, #tpu.memory_space<vmem>>) attributes {dimension_semantics = [#tpu.dimension_semantics<parallel>, #tpu.dimension_semantics<arbitrary>], iteration_bounds = array<i64: 2, 2>, scalar_prefetch = 0 : i64, scratch_operands = 1 : i64, tpu.core_type = #tpu.core_type<tc>, window_params = [{transform_indices = @transform_0, window_bounds = array<i64: 1, 1>}, {transform_indices = @transform_1, window_bounds = array<i64: 128, 128>}, {pipeline_mode = #tpu.pipeline_mode<synchronous>, transform_indices = @transform_2, window_bounds = array<i64: 256, 128>}, {transform_indices = @transform_3, window_bounds = array<i64: 128, 128>}, {pipeline_mode = #tpu.pipeline_mode<synchronous>, transform_indices = @transform_4, window_bounds = array<i64: 128, 128>}, {pipeline_mode = #tpu.pipeline_mode<synchronous>, transform_indices = @transform_5, window_bounds = array<i64: 1, 128>}, {pipeline_mode = #tpu.pipeline_mode<synchronous>, transform_indices = @transform_6, window_bounds = array<i64: 128, 128>}, {pipeline_mode = #tpu.pipeline_mode<synchronous>, transform_indices = @transform_7, window_bounds = array<i64: 1, 128>}, {transform_indices = @transform_8, window_bounds = array<i64: 128, 128>}]} {
    %c0_i32 = arith.constant 0 : i32
    %0 = arith.cmpi eq, %arg1, %c0_i32 : i32
    %1 = arith.extui %0 : i1 to i32
    %c0_i32_0 = arith.constant 0 : i32
    %2 = arith.cmpi ne, %1, %c0_i32_0 : i32
    scf.if %2 {
      %cst_8 = arith.constant 0.000000e+00 : f32
      %16 = vector.broadcast %cst_8 : f32 to vector<128x128xf32>
      %c0_9 = arith.constant 0 : index
      %c0_10 = arith.constant 0 : index
      %17 = vector.load %arg11[%c0_9, %c0_10] : memref<128x128xf32, #tpu.memory_space<vmem>>, vector<128x128xf32>
      tpu.vector_store %arg11[%c0_9, %c0_10], %16 {strides = array<i32>} : memref<128x128xf32, #tpu.memory_space<vmem>>, vector<128x128xf32>,
    } else {
    }
    %c0 = arith.constant 0 : index
    %c0_1 = arith.constant 0 : index
    %3 = vector.load %arg3[%c0, %c0_1] : memref<128x128xi8, #tpu.memory_space<vmem>>, vector<128x128xi8>
    %4 = arith.sitofp %3 : vector<128x128xi8> to vector<128x128xbf16>
    %c128_i32 = arith.constant 128 : i32
    %5 = arith.muli %arg1, %c128_i32 : i32
    %6 = tpu.assume_multiple %5, 128 : i32
    %7 = arith.index_cast %6 : i32 to index
    %c0_2 = arith.constant 0 : index
    %8 = vector.load %arg4[%7, %c0_2] : memref<256x128xbf16, #tpu.memory_space<vmem>>, vector<128x128xbf16>
    %c0_3 = arith.constant 0 : index
    %c0_4 = arith.constant 0 : index
    %9 = vector.load %arg11[%c0_3, %c0_4] : memref<128x128xf32, #tpu.memory_space<vmem>>, vector<128x128xf32>
    %cst = arith.constant dense<0.000000e+00> : vector<128x128xf32>
    %10 = tpu.matmul %4, %8, %cst {dimension_numbers = #tpu.dot_dimension_numbers<[1], [0], [0], [1], [0, 0, 1, 1], [], []>} : vector<128x128xbf16>, vector<128x128xbf16>, vector<128x128xf32> -> vector<128x128xf32>
    %11 = arith.addf %9, %10 : vector<128x128xf32>
    %c0_5 = arith.constant 0 : index
    %c0_6 = arith.constant 0 : index
    %12 = vector.load %arg11[%c0_5, %c0_6] : memref<128x128xf32, #tpu.memory_space<vmem>>, vector<128x128xf32>
    tpu.vector_store %arg11[%c0_5, %c0_6], %11 {strides = array<i32>} : memref<128x128xf32, #tpu.memory_space<vmem>>, vector<128x128xf32>,
    %c1_i32 = arith.constant 1 : i32
    %13 = arith.cmpi eq, %arg1, %c1_i32 : i32
    %14 = arith.extui %13 : i1 to i32
    %c0_i32_7 = arith.constant 0 : i32
    %15 = arith.cmpi ne, %14, %c0_i32_7 : i32
    scf.if %15 {
      %c0_8 = arith.constant 0 : index
      %c0_9 = arith.constant 0 : index
      %16 = memref.load %arg2[%c0_8, %c0_9] : memref<1x1xf32, #tpu.memory_space<smem>>
      %c0_10 = arith.constant 0 : index
      %c0_11 = arith.constant 0 : index
      %17 = vector.load %arg11[%c0_10, %c0_11] : memref<128x128xf32, #tpu.memory_space<vmem>>, vector<128x128xf32>
      %cst_12 = arith.constant 1.000000e+00 : f32
      %18 = arith.addf %cst_12, %16 : f32
      %c0_13 = arith.constant 0 : index
      %c0_14 = arith.constant 0 : index
      %19 = vector.load %arg5[%c0_13, %c0_14] : memref<128x128xf32, #tpu.memory_space<vmem>>, vector<128x128xf32>
      %20 = vector.broadcast %18 : f32 to vector<128x128xf32>
      %21 = arith.mulf %20, %19 : vector<128x128xf32>
      %22 = arith.addf %17, %21 : vector<128x128xf32>
      %23 = arith.truncf %22 : vector<128x128xf32> to vector<128x128xbf16>
      %c0_15 = arith.constant 0 : index
      %c0_16 = arith.constant 0 : index
      %24 = vector.load %arg6[%c0_15, %c0_16] : memref<128x128xbf16, #tpu.memory_space<vmem>>, vector<128x128xbf16>
      %cst_17 = arith.constant dense<0.000000e+00> : vector<128x128xf32>
      %25 = tpu.matmul %23, %24, %cst_17 {dimension_numbers = #tpu.dot_dimension_numbers<[1], [0], [0], [1], [0, 0, 1, 1], [], []>} : vector<128x128xbf16>, vector<128x128xbf16>, vector<128x128xf32> -> vector<128x128xf32>
      %c0_18 = arith.constant 0 : index
      %c0_19 = arith.constant 0 : index
      %26 = vector.load %arg7[%c0_18, %c0_19] : memref<1x128xbf16, #tpu.memory_space<vmem>>, vector<1x128xbf16>
      %27 = arith.extf %26 : vector<1x128xbf16> to vector<1x128xf32>
      %28 = vector.broadcast %27 : vector<1x128xf32> to vector<128x128xf32>
      %29 = arith.addf %25, %28 : vector<128x128xf32>
      %cst_20 = arith.constant 0.000000e+00 : f32
      %30 = vector.broadcast %cst_20 : f32 to vector<128x128xf32>
      %31 = arith.maximumf %29, %30 : vector<128x128xf32>
      %32 = arith.truncf %31 : vector<128x128xf32> to vector<128x128xbf16>
      %c0_21 = arith.constant 0 : index
      %c0_22 = arith.constant 0 : index
      %33 = vector.load %arg8[%c0_21, %c0_22] : memref<128x128xbf16, #tpu.memory_space<vmem>>, vector<128x128xbf16>
      %cst_23 = arith.constant dense<0.000000e+00> : vector<128x128xf32>
      %34 = tpu.matmul %32, %33, %cst_23 {dimension_numbers = #tpu.dot_dimension_numbers<[1], [0], [0], [1], [0, 0, 1, 1], [], []>} : vector<128x128xbf16>, vector<128x128xbf16>, vector<128x128xf32> -> vector<128x128xf32>
      %c0_24 = arith.constant 0 : index
      %c0_25 = arith.constant 0 : index
      %35 = vector.load %arg9[%c0_24, %c0_25] : memref<1x128xbf16, #tpu.memory_space<vmem>>, vector<1x128xbf16>
      %36 = arith.extf %35 : vector<1x128xbf16> to vector<1x128xf32>
      %37 = vector.broadcast %36 : vector<1x128xf32> to vector<128x128xf32>
      %38 = arith.addf %34, %37 : vector<128x128xf32>
      %c0_26 = arith.constant 0 : index
      %c0_27 = arith.constant 0 : index
      %39 = vector.load %arg10[%c0_26, %c0_27] : memref<128x128xf32, #tpu.memory_space<vmem>>, vector<128x128xf32>
      tpu.vector_store %arg10[%c0_26, %c0_27], %38 {strides = array<i32>} : memref<128x128xf32, #tpu.memory_space<vmem>>, vector<128x128xf32>,
    } else {
    }
    return
  }
  func.func @transform_0(%arg0: i32, %arg1: i32) -> (i32, i32) {
    %c0_i32 = arith.constant 0 : i32
    %c0_i32_0 = arith.constant 0 : i32
    %c0_i32_1 = arith.constant 0 : i32
    return %c0_i32, %c0_i32_0 : i32, i32
  }
  func.func @transform_1(%arg0: i32, %arg1: i32) -> (i32, i32) {
    %c0_i32 = arith.constant 0 : i32
    return %arg0, %arg1 : i32, i32
  }
  func.func @transform_2(%arg0: i32, %arg1: i32) -> (i32, i32) {
    %c0_i32 = arith.constant 0 : i32
    %c0_i32_0 = arith.constant 0 : i32
    %c0_i32_1 = arith.constant 0 : i32
    return %c0_i32, %c0_i32_0 : i32, i32
  }
  func.func @transform_3(%arg0: i32, %arg1: i32) -> (i32, i32) {
    %c0_i32 = arith.constant 0 : i32
    %c0_i32_0 = arith.constant 0 : i32
    return %arg0, %c0_i32 : i32, i32
  }
  func.func @transform_4(%arg0: i32, %arg1: i32) -> (i32, i32) {
    %c0_i32 = arith.constant 0 : i32
    %c0_i32_0 = arith.constant 0 : i32
    %c0_i32_1 = arith.constant 0 : i32
    return %c0_i32, %c0_i32_0 : i32, i32
  }
  func.func @transform_5(%arg0: i32, %arg1: i32) -> (i32, i32) {
    %c0_i32 = arith.constant 0 : i32
    %c0_i32_0 = arith.constant 0 : i32
    %c0_i32_1 = arith.constant 0 : i32
    return %c0_i32, %c0_i32_0 : i32, i32
  }
  func.func @transform_6(%arg0: i32, %arg1: i32) -> (i32, i32) {
    %c0_i32 = arith.constant 0 : i32
    %c0_i32_0 = arith.constant 0 : i32
    %c0_i32_1 = arith.constant 0 : i32
    return %c0_i32, %c0_i32_0 : i32, i32
  }
  func.func @transform_7(%arg0: i32, %arg1: i32) -> (i32, i32) {
    %c0_i32 = arith.constant 0 : i32
    %c0_i32_0 = arith.constant 0 : i32
    %c0_i32_1 = arith.constant 0 : i32
    return %c0_i32, %c0_i32_0 : i32, i32
  }
  func.func @transform_8(%arg0: i32, %arg1: i32) -> (i32, i32) {
    %c0_i32 = arith.constant 0 : i32
    %c0_i32_0 = arith.constant 0 : i32
    return %arg0, %c0_i32 : i32, i32
  }
}

</mosaic_0001>

<llo_original>
// kernel: tpu_custom_call.1
$region0: #{tpu_custom_call.1}
  #allocation0 [shape = 'u32[]', space=smem, size = 0x4, offset = 0x4, fixed_abs, tag = 'smem constant byte address 0x4 - core index']
  #allocation1 [shape = 'u32[72,128]{1,0:T(1,128)}', space=vmem, size = 0x9000, scoped, tag = 'internal scratch']
  #allocation2 [shape = 'f32[128,128]{1,0:T(8,128)}', space=vmem, size = 0x10000, scoped, tag = 'scratch operand']
  #allocation3 [shape = 'f32[1,1]{1,0:T(1,128)S(6)}', space=smem, size = 0x200, scoped, tag = 'scoped memory for tpu_custom_call.1']
  %s0 = inlined_call_operand.<no memory space> [shape: f32[1,1], index: 0, kind: input, shape index: {}]
  %s1 = inlined_call_operand.hbm [shape: s8[256,256], index: 1, kind: input, shape index: {}]
  %s2 = inlined_call_operand.hbm [shape: bf16[256,128], index: 2, kind: input, shape index: {}]
  %s3 = inlined_call_operand.hbm [shape: f32[256,128], index: 3, kind: input, shape index: {}]
  %s4 = inlined_call_operand.hbm [shape: bf16[128,128], index: 4, kind: input, shape index: {}]
  %s5 = inlined_call_operand.vmem [shape: bf16[1,128], index: 5, kind: input, shape index: {}]
  %s6 = inlined_call_operand.hbm [shape: bf16[128,128], index: 6, kind: input, shape index: {}]
  %s7 = inlined_call_operand.vmem [shape: bf16[1,128], index: 7, kind: input, shape index: {}]
  %s8 = inlined_call_operand.hbm [shape: f32[256,128], index: 8, kind: output, shape index: {}]
  %s9 = sld [smem:[#allocation0]]
  $region93: #{tpu_custom_call.1} parent=0
    _
  %s11 = ssub.s32 1, %s9
  %s12 = scalar_select 0, %s11, %s9
  %13 = sst [smem:[#allocation3]] %s0
  $region1: #{tpu_custom_call.1} parent=0
    #allocation4 [shape = 'u8[32768]{0}', space=vmem, size = 0x8000, scoped, tag = 'input window, operand 1']
    #allocation5 [shape = 's32[2]{0}', space=sflag, size = 0x8, scoped, tag = 'scoped memory for tpu_custom_call.1']
    #allocation6 [shape = 's32[2]{0}', space=sflag, size = 0x8, scoped, tag = 'scoped memory for tpu_custom_call.1']
    #allocation7 [shape = 'u8[65536]{0}', space=vmem, size = 0x10000, scoped, tag = 'input window, operand 2, single buffered']
    #allocation8 [shape = 's32[1]{0}', space=sflag, size = 0x4, scoped, tag = 'scoped memory for tpu_custom_call.1']
    #allocation9 [shape = 'u8[131072]{0}', space=vmem, size = 0x20000, scoped, tag = 'input window, operand 3']
    #allocation10 [shape = 'u8[32768]{0}', space=vmem, size = 0x8000, scoped, tag = 'input window, operand 4, single buffered']
    #allocation11 [shape = 'u8[32768]{0}', space=vmem, size = 0x8000, scoped, tag = 'input window, operand 6, single buffered']
    #allocation12 [shape = 's32[1]{0}', space=sflag, size = 0x4, scoped, tag = 'scoped memory for tpu_custom_call.1']
    #allocation13 [shape = 'u8[131072]{0}', space=vmem, size = 0x20000, scoped, tag = 'output window, operand 0']
    %14 = vsyncpa [#allocation5], 0
    %s15 = scalar_lea.sflag [#allocation5], 1
    %16 = vsyncpa %s15, 0
    %17 = vsyncpa [#allocation8], 0
    %18 = vsyncpa [#allocation12], 0
    %19 = vsyncpa [#allocation6], 0
    %s20 = scalar_lea.sflag [#allocation6], 1
    %21 = vsyncpa %s20, 0
    loop: start=0, step=1, limit=6
    $region2: #{tpu_custom_call.1} parent=1 // loop_pre_header
      _
    $region3: #{tpu_custom_call.1} parent=1 // loop_header
      %s23 = sphi 0, %s27
      %p24 = scmp.ge.s32.totalorder %s23, 6
      %s30 = sphi 0, %s42
      %s31 = sphi 0, %s38
      %s32 = sphi 0, %s30
      %s33 = sphi 0, %s31
      %s34 = sphi 0, %s32
      %s35 = sphi 0, %s33
      %s43 = sphi 0, %s43
      %s45 = sphi 0, %s43
      %s46 = sphi 0, %s45
      %s60 = sphi 0, %s46
      %s68 = sphi 0, %s70
      %s71 = sphi 0, %s68
      %s72 = sphi 0, %s71
      %s88 = sphi 0, %s72
      %s92 = sphi 0, %s92
      %s94 = sphi 0, %s92
      %s95 = sphi 0, %s94
      %s109 = sphi 0, %s95
      %s115 = sphi 0, %s117
      %s118 = sphi 0, %s115
      %s119 = sphi 0, %s118
      %s135 = sphi 0, %s119
      %s139 = sphi 0, %s139
      %s141 = sphi 0, %s139
      %s142 = sphi 0, %s141
      %s156 = sphi 0, %s142
      %s160 = sphi 0, %s160
      %s162 = sphi 0, %s160
      %s163 = sphi 0, %s162
      %s177 = sphi 0, %s163
      %s181 = sphi 0, %s181
      %s183 = sphi 0, %s181
      %s184 = sphi 0, %s183
      %s198 = sphi 0, %s184
      %s202 = sphi 0, %s202
      %s204 = sphi 0, %s202
      %s205 = sphi 0, %s204
      %s219 = sphi 0, %s205
      %s225 = sphi 0, %s227
      %s228 = sphi 0, %s225
      %s229 = sphi 0, %s228
      %s245 = sphi 0, %s229
    $region4: #{tpu_custom_call.1} parent=1 // loop_header_branch
      %26 = sbr.rel (%p24) target = $region8
    $region5: #{tpu_custom_call.1} parent=1 // loop_body
      %s28 = ssub.s32 %s23, 1
      %s29 = ssub.s32 %s23, 2
      %s36 = sadd.s32 1, %s31
      %p37 = scmp.ge.s32.totalorder %s36, 2
      %s38 = scalar_select %p37, 0, %s36
      %s39 = sadd.s32 1, %s30
      %s40 = scalar_select %p37, %s39, %s30
      %p41 = scmp.ge.s32.totalorder %s40, 2
      %s42 = scalar_select %p41, 0, %s40
      %s44 = sadd.s32 %s43, 1
      %p47 = scmp.eq.s32.totalorder %s23, 3
      %p48 = scmp.ne.s32.totalorder %s43, %s45
      %p49 = scmp.eq.s32.totalorder %s23, 0
      %p50 = por %p48, %p49
      %p51 = scmp.ne.s32.totalorder %s43, %s45
      %p52 = scmp.eq.s32.totalorder %s28, 3
      %p53 = por %p51, %p52
      %p54 = scmp.ne.s32.totalorder %s45, %s46
      %p55 = scmp.eq.s32.totalorder %s28, 0
      %p56 = por %p54, %p55
      %p57 = scmp.ne.s32.totalorder %s45, %s46
      %p58 = scmp.eq.s32.totalorder %s29, 3
      %p59 = por %p57, %p58
      %p61 = scmp.ne.s32.totalorder %s46, %s60
      %p62 = scmp.eq.s32.totalorder %s29, 0
      %p63 = por %p61, %p62
      %s64 = ssub.s32 %s30, %s42
      %s65 = ssub.s32 %s31, %s38
      %s66 = sor.u32 %s64, %s65
      %p67 = scmp.eq.s32.totalorder %s66, 0
      %s69 = sadd.s32 %s68, 1
      %s70 = scalar_select %p67, %s68, %s69
      %p73 = pneg %p67
      %p74 = scmp.eq.s32.totalorder %s23, 3
      %p75 = por %p73, %p74
      %p76 = scmp.ne.s32.totalorder %s68, %s71
      %p77 = scmp.eq.s32.totalorder %s23, 0
      %p78 = por %p76, %p77
      %p79 = scmp.ne.s32.totalorder %s68, %s71
      %p80 = scmp.eq.s32.totalorder %s28, 3
      %p81 = por %p79, %p80
      %p82 = scmp.ne.s32.totalorder %s71, %s72
      %p83 = scmp.eq.s32.totalorder %s28, 0
      %p84 = por %p82, %p83
      %p85 = scmp.ne.s32.totalorder %s71, %s72
      %p86 = scmp.eq.s32.totalorder %s29, 3
      %p87 = por %p85, %p86
      %p89 = scmp.ne.s32.totalorder %s72, %s88
      %p90 = scmp.eq.s32.totalorder %s29, 0
      %p91 = por %p89, %p90
      %s93 = sadd.s32 %s92, 1
      %p96 = scmp.eq.s32.totalorder %s23, 3
      %p97 = scmp.ne.s32.totalorder %s92, %s94
      %p98 = scmp.eq.s32.totalorder %s23, 0
      %p99 = por %p97, %p98
      %p100 = scmp.ne.s32.totalorder %s92, %s94
      %p101 = scmp.eq.s32.totalorder %s28, 3
      %p102 = por %p100, %p101
      %p103 = scmp.ne.s32.totalorder %s94, %s95
      %p104 = scmp.eq.s32.totalorder %s28, 0
      %p105 = por %p103, %p104
      %p106 = scmp.ne.s32.totalorder %s94, %s95
      %p107 = scmp.eq.s32.totalorder %s29, 3
      %p108 = por %p106, %p107
      %p110 = scmp.ne.s32.totalorder %s95, %s109
      %p111 = scmp.eq.s32.totalorder %s29, 0
      %p112 = por %p110, %p111
      %s113 = ssub.s32 %s30, %s42
      %p114 = scmp.eq.s32.totalorder %s113, 0
      %s116 = sadd.s32 %s115, 1
      %s117 = scalar_select %p114, %s115, %s116
      %p120 = pneg %p114
      %p121 = scmp.eq.s32.totalorder %s23, 3
      %p122 = por %p120, %p121
      %p123 = scmp.ne.s32.totalorder %s115, %s118
      %p124 = scmp.eq.s32.totalorder %s23, 0
      %p125 = por %p123, %p124
      %p126 = scmp.ne.s32.totalorder %s115, %s118
      %p127 = scmp.eq.s32.totalorder %s28, 3
      %p128 = por %p126, %p127
      %p129 = scmp.ne.s32.totalorder %s118, %s119
      %p130 = scmp.eq.s32.totalorder %s28, 0
      %p131 = por %p129, %p130
      %p132 = scmp.ne.s32.totalorder %s118, %s119
      %p133 = scmp.eq.s32.totalorder %s29, 3
      %p134 = por %p132, %p133
      %p136 = scmp.ne.s32.totalorder %s119, %s135
      %p137 = scmp.eq.s32.totalorder %s29, 0
      %p138 = por %p136, %p137
      %s140 = sadd.s32 %s139, 1
      %p143 = scmp.eq.s32.totalorder %s23, 3
      %p144 = scmp.ne.s32.totalorder %s139, %s141
      %p145 = scmp.eq.s32.totalorder %s23, 0
      %p146 = por %p144, %p145
      %p147 = scmp.ne.s32.totalorder %s139, %s141
      %p148 = scmp.eq.s32.totalorder %s28, 3
      %p149 = por %p147, %p148
      %p150 = scmp.ne.s32.totalorder %s141, %s142
      %p151 = scmp.eq.s32.totalorder %s28, 0
      %p152 = por %p150, %p151
      %p153 = scmp.ne.s32.totalorder %s141, %s142
      %p154 = scmp.eq.s32.totalorder %s29, 3
      %p155 = por %p153, %p154
      %p157 = scmp.ne.s32.totalorder %s142, %s156
      %p158 = scmp.eq.s32.totalorder %s29, 0
      %p159 = por %p157, %p158
      %s161 = sadd.s32 %s160, 1
      %p164 = scmp.eq.s32.totalorder %s23, 3
      %p165 = scmp.ne.s32.totalorder %s160, %s162
      %p166 = scmp.eq.s32.totalorder %s23, 0
      %p167 = por %p165, %p166
      %p168 = scmp.ne.s32.totalorder %s160, %s162
      %p169 = scmp.eq.s32.totalorder %s28, 3
      %p170 = por %p168, %p169
      %p171 = scmp.ne.s32.totalorder %s162, %s163
      %p172 = scmp.eq.s32.totalorder %s28, 0
      %p173 = por %p171, %p172
      %p174 = scmp.ne.s32.totalorder %s162, %s163
      %p175 = scmp.eq.s32.totalorder %s29, 3
      %p176 = por %p174, %p175
      %p178 = scmp.ne.s32.totalorder %s163, %s177
      %p179 = scmp.eq.s32.totalorder %s29, 0
      %p180 = por %p178, %p179
      %s182 = sadd.s32 %s181, 1
      %p185 = scmp.eq.s32.totalorder %s23, 3
      %p186 = scmp.ne.s32.totalorder %s181, %s183
      %p187 = scmp.eq.s32.totalorder %s23, 0
      %p188 = por %p186, %p187
      %p189 = scmp.ne.s32.totalorder %s181, %s183
      %p190 = scmp.eq.s32.totalorder %s28, 3
      %p191 = por %p189, %p190
      %p192 = scmp.ne.s32.totalorder %s183, %s184
      %p193 = scmp.eq.s32.totalorder %s28, 0
      %p194 = por %p192, %p193
      %p195 = scmp.ne.s32.totalorder %s183, %s184
      %p196 = scmp.eq.s32.totalorder %s29, 3
      %p197 = por %p195, %p196
      %p199 = scmp.ne.s32.totalorder %s184, %s198
      %p200 = scmp.eq.s32.totalorder %s29, 0
      %p201 = por %p199, %p200
      %s203 = sadd.s32 %s202, 1
      %p206 = scmp.eq.s32.totalorder %s23, 3
      %p207 = scmp.ne.s32.totalorder %s202, %s204
      %p208 = scmp.eq.s32.totalorder %s23, 0
      %p209 = por %p207, %p208
      %p210 = scmp.ne.s32.totalorder %s202, %s204
      %p211 = scmp.eq.s32.totalorder %s28, 3
      %p212 = por %p210, %p211
      %p213 = scmp.ne.s32.totalorder %s204, %s205
      %p214 = scmp.eq.s32.totalorder %s28, 0
      %p215 = por %p213, %p214
      %p216 = scmp.ne.s32.totalorder %s204, %s205
      %p217 = scmp.eq.s32.totalorder %s29, 3
      %p218 = por %p216, %p217
      %p220 = scmp.ne.s32.totalorder %s205, %s219
      %p221 = scmp.eq.s32.totalorder %s29, 0
      %p222 = por %p220, %p221
      %s223 = ssub.s32 %s30, %s42
      %p224 = scmp.eq.s32.totalorder %s223, 0
      %s226 = sadd.s32 %s225, 1
      %s227 = scalar_select %p224, %s225, %s226
      %p230 = pneg %p224
      %p231 = scmp.eq.s32.totalorder %s23, 3
      %p232 = por %p230, %p231
      %p233 = scmp.ne.s32.totalorder %s225, %s228
      %p234 = scmp.eq.s32.totalorder %s23, 0
      %p235 = por %p233, %p234
      %p236 = scmp.ne.s32.totalorder %s225, %s228
      %p237 = scmp.eq.s32.totalorder %s28, 3
      %p238 = por %p236, %p237
      %p239 = scmp.ne.s32.totalorder %s228, %s229
      %p240 = scmp.eq.s32.totalorder %s28, 0
      %p241 = por %p239, %p240
      %p242 = scmp.ne.s32.totalorder %s228, %s229
      %p243 = scmp.eq.s32.totalorder %s29, 3
      %p244 = por %p242, %p243
      %p246 = scmp.ne.s32.totalorder %s229, %s245
      %p247 = scmp.eq.s32.totalorder %s29, 0
      %p248 = por %p246, %p247
      %p249 = scmp.le.s32.totalorder 1, %s23
      %p250 = scmp.lt.s32.totalorder %s23, 5
      %p251 = pnand %p249, %p250
      %p252 = pneg %p251
      // Predicated region
      $region9: #{tpu_custom_call.1} parent=5 // pred_check
        _
      $region10: #{tpu_custom_call.1} parent=5 // pred_check_branch
        %254 = sbr.rel (%p251) target = $region12
      $region11: #{tpu_custom_call.1} parent=5 // pred_region
        %s255 = ssub.s32 %s23, 1
        // Predicated region
        $region13: #{tpu_custom_call.1} parent=11 // pred_check
          %p256 = pneg %p56
        $region14: #{tpu_custom_call.1} parent=11 // pred_check_branch
          %258 = sbr.rel (%p256) target = $region16
        $region15: #{tpu_custom_call.1} parent=11 // pred_region
          _
        $region16: #{tpu_custom_call.1} parent=11 // pred_fallthru
          _
        // Predicated region
        $region17: #{tpu_custom_call.1} parent=11 // pred_check
          %p259 = pneg %p105
        $region18: #{tpu_custom_call.1} parent=11 // pred_check_branch
          %261 = sbr.rel (%p259) target = $region20
        $region19: #{tpu_custom_call.1} parent=11 // pred_region
          %263 = vsyncadd [#allocation8], 0
          %s264 = sshll.u32 %s2, 4
          %s265 = int_to_ptr.hbm [resolvable:$true] %s264
          %s266 = sshll.u32 [#allocation7], 4
          %s267 = int_to_ptr.vmem [resolvable:$true] %s266
          %272 = dma.hbm_to_vmem [thread:$0]  %s265, 2048, %s267, [#allocation8], 64, 64, 4
        $region20: #{tpu_custom_call.1} parent=11 // pred_fallthru
          _
        // Predicated region
        $region21: #{tpu_custom_call.1} parent=11 // pred_check
          %p273 = pneg %p152
        $region22: #{tpu_custom_call.1} parent=11 // pred_check_branch
          %275 = sbr.rel (%p273) target = $region24
        $region23: #{tpu_custom_call.1} parent=11 // pred_region
          %277 = vsyncadd [#allocation8], 0
          %s278 = sshll.u32 %s4, 4
          %s279 = int_to_ptr.hbm [resolvable:$true] %s278
          %s280 = sshll.u32 [#allocation10], 4
          %s281 = int_to_ptr.vmem [resolvable:$true] %s280
          %286 = dma.hbm_to_vmem [thread:$0]  %s279, 1024, %s281, [#allocation8], 64, 64, 4
        $region24: #{tpu_custom_call.1} parent=11 // pred_fallthru
          _
        // Predicated region
        $region25: #{tpu_custom_call.1} parent=11 // pred_check
          %p287 = pneg %p173
        $region26: #{tpu_custom_call.1} parent=11 // pred_check_branch
          %289 = sbr.rel (%p287) target = $region28
        $region27: #{tpu_custom_call.1} parent=11 // pred_region
          _
        $region28: #{tpu_custom_call.1} parent=11 // pred_fallthru
          _
        // Predicated region
        $region29: #{tpu_custom_call.1} parent=11 // pred_check
          %p290 = pneg %p194
        $region30: #{tpu_custom_call.1} parent=11 // pred_check_branch
          %292 = sbr.rel (%p290) target = $region32
        $region31: #{tpu_custom_call.1} parent=11 // pred_region
          %294 = vsyncadd [#allocation12], 0
          %s295 = sshll.u32 %s6, 4
          %s296 = int_to_ptr.hbm [resolvable:$true] %s295
          %s297 = sshll.u32 [#allocation11], 4
          %s298 = int_to_ptr.vmem [resolvable:$true] %s297
          %303 = dma.hbm_to_vmem [thread:$0]  %s296, 1024, %s298, [#allocation12], 64, 64, 4
        $region32: #{tpu_custom_call.1} parent=11 // pred_fallthru
          _
        // Predicated region
        $region33: #{tpu_custom_call.1} parent=11 // pred_check
          %p304 = pneg %p215
        $region34: #{tpu_custom_call.1} parent=11 // pred_check_branch
          %306 = sbr.rel (%p304) target = $region36
        $region35: #{tpu_custom_call.1} parent=11 // pred_region
          _
        $region36: #{tpu_custom_call.1} parent=11 // pred_fallthru
          _
      $region12: #{tpu_custom_call.1} parent=5 // pred_fallthru
        _
      %p307 = scmp.lt.s32.totalorder %s23, 4
      // Predicated region
      $region37: #{tpu_custom_call.1} parent=5 // pred_check
        %p308 = pneg %p307
      $region38: #{tpu_custom_call.1} parent=5 // pred_check_branch
        %310 = sbr.rel (%p308) target = $region40
      $region39: #{tpu_custom_call.1} parent=5 // pred_region
        // Predicated region
        $region41: #{tpu_custom_call.1} parent=39 // pred_check
          %p311 = pneg %p78
        $region42: #{tpu_custom_call.1} parent=39 // pred_check_branch
          %313 = sbr.rel (%p311) target = $region44
        $region43: #{tpu_custom_call.1} parent=39 // pred_region
          %s314 = sand.u32 %s23, 1
          %s315 = scalar_lea.sflag [#allocation5], %s314
          %s316 = sand.u32 %s68, 1
          %s317 = smul.addr %s316, 32
          %s318 = scalar_lea.vmem [#allocation4], %s317
          %s319 = smul.u32 4, %s30
          %321 = vsyncadd %s315, 0
          %s322 = smul.addr %s319, 2
          %s323 = sadd.s32 %s31, %s322
          %s324 = smul.addr %s323, 8
          %s325 = scalar_lea.hbm %s1, %s324
          %s326 = sshll.u32 %s325, 4
          %s327 = int_to_ptr.hbm [resolvable:$true] %s326
          %s328 = sshll.u32 %s318, 4
          %s329 = int_to_ptr.vmem [resolvable:$true] %s328
          %334 = dma.hbm_to_vmem [thread:$0]  %s327, 512, %s329, %s315, 256, 128, 8
        $region44: #{tpu_custom_call.1} parent=39 // pred_fallthru
          _
        // Predicated region
        $region45: #{tpu_custom_call.1} parent=39 // pred_check
          %p335 = pneg %p125
        $region46: #{tpu_custom_call.1} parent=39 // pred_check_branch
          %337 = sbr.rel (%p335) target = $region48
        $region47: #{tpu_custom_call.1} parent=39 // pred_region
          %s338 = sand.u32 %s23, 1
          %s339 = scalar_lea.sflag [#allocation5], %s338
          %s340 = sand.u32 %s115, 1
          %s341 = smul.addr %s340, 128
          %s342 = scalar_lea.vmem [#allocation9], %s341
          %s343 = smul.u32 16, %s30
          %345 = vsyncadd %s339, 0
          %s346 = smul.addr %s343, 8
          %s347 = scalar_lea.hbm %s3, %s346
          %s348 = sshll.u32 %s347, 4
          %s349 = int_to_ptr.hbm [resolvable:$true] %s348
          %s350 = sshll.u32 %s342, 4
          %s351 = int_to_ptr.vmem [resolvable:$true] %s350
          %356 = dma.hbm_to_vmem [thread:$0]  %s349, 2048, %s351, %s339, 128, 128, 8
        $region48: #{tpu_custom_call.1} parent=39 // pred_fallthru
          _
      $region40: #{tpu_custom_call.1} parent=5 // pred_fallthru
        _
      %p357 = scmp.le.s32.totalorder 1, %s23
      %p358 = scmp.lt.s32.totalorder %s23, 5
      %p359 = pnand %p357, %p358
      %p360 = pneg %p359
      // Predicated region
      $region49: #{tpu_custom_call.1} parent=5 // pred_check
        _
      $region50: #{tpu_custom_call.1} parent=5 // pred_check_branch
        %362 = sbr.rel (%p359) target = $region52
      $region51: #{tpu_custom_call.1} parent=5 // pred_region
        %s363 = ssub.s32 %s23, 1
        %s364 = sand.u32 %s28, 1
        %s365 = scalar_lea.sflag [#allocation5], %s364
        %s366 = sand.u32 %s71, 1
        %s367 = smul.addr %s366, 32
        %s368 = scalar_lea.vmem [#allocation4], %s367
        // Predicated region
        $region53: #{tpu_custom_call.1} parent=51 // pred_check
          %p369 = pneg %p84
        $region54: #{tpu_custom_call.1} parent=51 // pred_check_branch
          %371 = sbr.rel (%p369) target = $region56
        $region55: #{tpu_custom_call.1} parent=51 // pred_region
          %373 = dma.done %s365, 512
        $region56: #{tpu_custom_call.1} parent=51 // pred_fallthru
          _
        // Predicated region
        $region57: #{tpu_custom_call.1} parent=51 // pred_check
          %p374 = pneg %p105
        $region58: #{tpu_custom_call.1} parent=51 // pred_check_branch
          %376 = sbr.rel (%p374) target = $region60
        $region59: #{tpu_custom_call.1} parent=51 // pred_region
          %378 = dma.done [#allocation8], 2048
        $region60: #{tpu_custom_call.1} parent=51 // pred_fallthru
          _
        %s379 = sand.u32 %s28, 1
        %s380 = scalar_lea.sflag [#allocation5], %s379
        %s381 = sand.u32 %s118, 1
        %s382 = smul.addr %s381, 128
        %s383 = scalar_lea.vmem [#allocation9], %s382
        // Predicated region
        $region61: #{tpu_custom_call.1} parent=51 // pred_check
          %p384 = pneg %p131
        $region62: #{tpu_custom_call.1} parent=51 // pred_check_branch
          %386 = sbr.rel (%p384) target = $region64
        $region63: #{tpu_custom_call.1} parent=51 // pred_region
          %388 = dma.done %s380, 2048
        $region64: #{tpu_custom_call.1} parent=51 // pred_fallthru
          _
        // Predicated region
        $region65: #{tpu_custom_call.1} parent=51 // pred_check
          %p389 = pneg %p152
        $region66: #{tpu_custom_call.1} parent=51 // pred_check_branch
          %391 = sbr.rel (%p389) target = $region68
        $region67: #{tpu_custom_call.1} parent=51 // pred_region
          %393 = dma.done [#allocation8], 1024
        $region68: #{tpu_custom_call.1} parent=51 // pred_fallthru
          _
        // Predicated region
        $region69: #{tpu_custom_call.1} parent=51 // pred_check
          %p394 = pneg %p194
        $region70: #{tpu_custom_call.1} parent=51 // pred_check_branch
          %396 = sbr.rel (%p394) target = $region72
        $region71: #{tpu_custom_call.1} parent=51 // pred_region
          %398 = dma.done [#allocation12], 1024
        $region72: #{tpu_custom_call.1} parent=51 // pred_fallthru
          _
        %p399 = pneg %p56
        %p400 = pneg %p53
        %s401 = sand.u32 %s28, 1
        %s402 = scalar_lea.sflag [#allocation5], %s401
        %s403 = sand.u32 %s71, 1
        %s404 = smul.addr %s403, 32
        %s405 = scalar_lea.vmem [#allocation4], %s404
        %p406 = pneg %p84
        %p407 = pneg %p81
        %p408 = pneg %p105
        %p409 = pneg %p102
        %s410 = sand.u32 %s28, 1
        %s411 = scalar_lea.sflag [#allocation5], %s410
        %s412 = sand.u32 %s118, 1
        %s413 = smul.addr %s412, 128
        %s414 = scalar_lea.vmem [#allocation9], %s413
        %p415 = pneg %p131
        %p416 = pneg %p128
        %p417 = pneg %p152
        %p418 = pneg %p149
        %p419 = pneg %p173
        %p420 = pneg %p170
        %p421 = pneg %p194
        %p422 = pneg %p191
        %p423 = pneg %p215
        %p424 = pneg %p212
        %p425 = pneg %p241
        %p426 = pneg %p238
        %s427 = sand.u32 %s228, 1
        %s428 = scalar_lea.sflag [#allocation6], %s427
        %s429 = sand.u32 %s228, 1
        %s430 = smul.addr %s429, 128
        %s431 = scalar_lea.vmem [#allocation13], %s430
        %s432 = smul.u32 4, %s32
        %s433 = smul.u32 16, %s32
        %s434 = smul.u32 16, %s32
        %p435 = scmp.eq.s32.totalorder %s33, 0
        // Predicated region
        $region73: #{tpu_custom_call.1} parent=51 // pred_check
          %p436 = pneg %p435
        $region74: #{tpu_custom_call.1} parent=51 // pred_check_branch
          %438 = sbr.rel (%p436) target = $region76
        $region75: #{tpu_custom_call.1} parent=51 // pred_region
          %439 = vst [vmem:[#allocation2] sm:$0xff] 0.0
          %440 = vst [vmem:[#allocation2 + $0x8] sm:$0xff] 0.0
          %441 = vst [vmem:[#allocation2 + $0x10] sm:$0xff] 0.0
          %442 = vst [vmem:[#allocation2 + $0x18] sm:$0xff] 0.0
          %443 = vst [vmem:[#allocation2 + $0x20] sm:$0xff] 0.0
          %444 = vst [vmem:[#allocation2 + $0x28] sm:$0xff] 0.0
          %445 = vst [vmem:[#allocation2 + $0x30] sm:$0xff] 0.0
          %446 = vst [vmem:[#allocation2 + $0x38] sm:$0xff] 0.0
          %447 = vst [vmem:[#allocation2 + $0x40] sm:$0xff] 0.0
          %448 = vst [vmem:[#allocation2 + $0x48] sm:$0xff] 0.0
          %449 = vst [vmem:[#allocation2 + $0x50] sm:$0xff] 0.0
          %450 = vst [vmem:[#allocation2 + $0x58] sm:$0xff] 0.0
          %451 = vst [vmem:[#allocation2 + $0x60] sm:$0xff] 0.0
          %452 = vst [vmem:[#allocation2 + $0x68] sm:$0xff] 0.0
          %453 = vst [vmem:[#allocation2 + $0x70] sm:$0xff] 0.0
          %454 = vst [vmem:[#allocation2 + $0x78] sm:$0xff] 0.0
        $region76: #{tpu_custom_call.1} parent=51 // pred_fallthru
          _
        %v455 = vld [vmem:[%s368] sm:$0xff]
        %v456 = vld [vmem:[%s368 + $0x8] sm:$0xff]
        %v457 = vld [vmem:[%s368 + $0x10] sm:$0xff]
        %v458 = vld [vmem:[%s368 + $0x18] sm:$0xff]
        %v459 = vunpack.c.0.s8 %v455
        %v460 = vunpack.c.1.s8 %v455
        %v461 = vunpack.c.2.s8 %v455
        %v462 = vunpack.c.3.s8 %v455
        %v463 = vunpack.c.0.s8 %v456
        %v464 = vunpack.c.1.s8 %v456
        %v465 = vunpack.c.2.s8 %v456
        %v466 = vunpack.c.3.s8 %v456
        %v467 = vunpack.c.0.s8 %v457
        %v468 = vunpack.c.1.s8 %v457
        %v469 = vunpack.c.2.s8 %v457
        %v470 = vunpack.c.3.s8 %v457
        %v471 = vunpack.c.0.s8 %v458
        %v472 = vunpack.c.1.s8 %v458
        %v473 = vunpack.c.2.s8 %v458
        %v474 = vunpack.c.3.s8 %v458
        %v475 = vcvt.s32.f32 %v459
        %v476 = vcvt.s32.f32 %v460
        %v477 = vcvt.s32.f32 %v461
        %v478 = vcvt.s32.f32 %v462
        %v479 = vcvt.s32.f32 %v463
        %v480 = vcvt.s32.f32 %v464
        %v481 = vcvt.s32.f32 %v465
        %v482 = vcvt.s32.f32 %v466
        %v483 = vcvt.s32.f32 %v467
        %v484 = vcvt.s32.f32 %v468
        %v485 = vcvt.s32.f32 %v469
        %v486 = vcvt.s32.f32 %v470
        %v487 = vcvt.s32.f32 %v471
        %v488 = vcvt.s32.f32 %v472
        %v489 = vcvt.s32.f32 %v473
        %v490 = vcvt.s32.f32 %v474
        %v491 = vpack.c.bf16 %v476, %v475
        %v492 = vpack.c.bf16 %v478, %v477
        %v493 = vpack.c.bf16 %v480, %v479
        %v494 = vpack.c.bf16 %v482, %v481
        %v495 = vpack.c.bf16 %v484, %v483
        %v496 = vpack.c.bf16 %v486, %v485
        %v497 = vpack.c.bf16 %v488, %v487
        %v498 = vpack.c.bf16 %v490, %v489
        %s499 = smul.u32 %s33, 128
        %s500 = sshra.s32 %s499, 3
        %s501 = sand.u32 %s499, 7
        %s502 = smul.addr %s500, 4
        %s503 = scalar_lea.vmem [#allocation7], %s502
        %v504 = vld [vmem:[%s503] sm:$0xf]
        %v505 = vld [vmem:[%s503 + $0x4] sm:$0xf]
        %v506 = vld [vmem:[%s503 + $0x8] sm:$0xf]
        %v507 = vld [vmem:[%s503 + $0xc] sm:$0xf]
        %v508 = vld [vmem:[%s503 + $0x10] sm:$0xf]
        %v509 = vld [vmem:[%s503 + $0x14] sm:$0xf]
        %v510 = vld [vmem:[%s503 + $0x18] sm:$0xf]
        %v511 = vld [vmem:[%s503 + $0x1c] sm:$0xf]
        %v512 = vld [vmem:[%s503 + $0x20] sm:$0xf]
        %v513 = vld [vmem:[%s503 + $0x24] sm:$0xf]
        %v514 = vld [vmem:[%s503 + $0x28] sm:$0xf]
        %v515 = vld [vmem:[%s503 + $0x2c] sm:$0xf]
        %v516 = vld [vmem:[%s503 + $0x30] sm:$0xf]
        %v517 = vld [vmem:[%s503 + $0x34] sm:$0xf]
        %v518 = vld [vmem:[%s503 + $0x38] sm:$0xf]
        %v519 = vld [vmem:[%s503 + $0x3c] sm:$0xf]
        %v520 = vld [vmem:[#allocation2] sm:$0xff]
        %v521 = vld [vmem:[#allocation2 + $0x8] sm:$0xff]
        %v522 = vld [vmem:[#allocation2 + $0x10] sm:$0xff]
        %v523 = vld [vmem:[#allocation2 + $0x18] sm:$0xff]
        %v524 = vld [vmem:[#allocation2 + $0x20] sm:$0xff]
        %v525 = vld [vmem:[#allocation2 + $0x28] sm:$0xff]
        %v526 = vld [vmem:[#allocation2 + $0x30] sm:$0xff]
        %v527 = vld [vmem:[#allocation2 + $0x38] sm:$0xff]
        %v528 = vld [vmem:[#allocation2 + $0x40] sm:$0xff]
        %v529 = vld [vmem:[#allocation2 + $0x48] sm:$0xff]
        %v530 = vld [vmem:[#allocation2 + $0x50] sm:$0xff]
        %v531 = vld [vmem:[#allocation2 + $0x58] sm:$0xff]
        %v532 = vld [vmem:[#allocation2 + $0x60] sm:$0xff]
        %v533 = vld [vmem:[#allocation2 + $0x68] sm:$0xff]
        %v534 = vld [vmem:[#allocation2 + $0x70] sm:$0xff]
        %v535 = vld [vmem:[#allocation2 + $0x78] sm:$0xff]
        %v552 = vunpack.c.l.b16 %v504
        %v553 = vunpack.c.l.b16 %v505
        %v554 = vunpack.c.l.b16 %v506
        %v555 = vunpack.c.l.b16 %v507
        %v556 = vunpack.c.l.b16 %v508
        %v557 = vunpack.c.l.b16 %v509
        %v558 = vunpack.c.l.b16 %v510
        %v559 = vunpack.c.l.b16 %v511
        %v560 = vunpack.c.l.b16 %v512
        %v561 = vunpack.c.l.b16 %v513
        %v562 = vunpack.c.l.b16 %v514
        %v563 = vunpack.c.l.b16 %v515
        %v564 = vunpack.c.l.b16 %v516
        %v565 = vunpack.c.l.b16 %v517
        %v566 = vunpack.c.l.b16 %v518
        %v567 = vunpack.c.l.b16 %v519
        %v568 = vpack.c.b16 %v553, %v552
        %v569 = vpack.c.b16 %v555, %v554
        %v570 = vpack.c.b16 %v557, %v556
        %v571 = vpack.c.b16 %v559, %v558
        %v572 = vpack.c.b16 %v561, %v560
        %v573 = vpack.c.b16 %v563, %v562
        %v574 = vpack.c.b16 %v565, %v564
        %v575 = vpack.c.b16 %v567, %v566
        %584 = vmatpush.bf16.msra.mxu0 %v575
        %585 = vmatpush.bf16.msra.mxu0 %v574
        %586 = vmatpush.bf16.msra.mxu0 %v573
        %587 = vmatpush.bf16.msra.mxu0 %v572
        %588 = vmatpush.bf16.msra.mxu0 %v571
        %589 = vmatpush.bf16.msra.mxu0 %v570
        %590 = vmatpush.bf16.msra.mxu0 %v569
        %591 = vmatpush.bf16.msra.mxu0 %v568
        %592 = vmatmul.bf16.gmra.mxu0 %v491
        %v593 = vpop.f32.mrf.mxu0
        %v594 = vadd.f32 0.0, %v593
        %v595 = vpop.f32.mrf.mxu0
        %v596 = vadd.f32 0.0, %v595
        %597 = vmatmul.bf16.gmra.mxu0 %v492
        %v598 = vpop.f32.mrf.mxu0
        %v599 = vadd.f32 0.0, %v598
        %v600 = vpop.f32.mrf.mxu0
        %v601 = vadd.f32 0.0, %v600
        %602 = vmatmul.bf16.gmra.mxu0 %v493
        %v603 = vpop.f32.mrf.mxu0
        %v604 = vadd.f32 0.0, %v603
        %v605 = vpop.f32.mrf.mxu0
        %v606 = vadd.f32 0.0, %v605
        %607 = vmatmul.bf16.gmra.mxu0 %v494
        %v608 = vpop.f32.mrf.mxu0
        %v609 = vadd.f32 0.0, %v608
        %v610 = vpop.f32.mrf.mxu0
        %v611 = vadd.f32 0.0, %v610
        %612 = vmatmul.bf16.gmra.mxu0 %v495
        %v613 = vpop.f32.mrf.mxu0
        %v614 = vadd.f32 0.0, %v613
        %v615 = vpop.f32.mrf.mxu0
        %v616 = vadd.f32 0.0, %v615
        %617 = vmatmul.bf16.gmra.mxu0 %v496
        %v618 = vpop.f32.mrf.mxu0
        %v619 = vadd.f32 0.0, %v618
        %v620 = vpop.f32.mrf.mxu0
        %v621 = vadd.f32 0.0, %v620
        %622 = vmatmul.bf16.gmra.mxu0 %v497
        %v623 = vpop.f32.mrf.mxu0
        %v624 = vadd.f32 0.0, %v623
        %v625 = vpop.f32.mrf.mxu0
        %v626 = vadd.f32 0.0, %v625
        %627 = vmatmul.bf16.gmra.mxu0 %v498
        %v628 = vpop.f32.mrf.mxu0
        %v629 = vadd.f32 0.0, %v628
        %v630 = vpop.f32.mrf.mxu0
        %v631 = vadd.f32 0.0, %v630
        %632 = vdwg.mxu0
        %v633 = vadd.f32 %v520, %v594
        %v634 = vadd.f32 %v521, %v596
        %v635 = vadd.f32 %v522, %v599
        %v636 = vadd.f32 %v523, %v601
        %v637 = vadd.f32 %v524, %v604
        %v638 = vadd.f32 %v525, %v606
        %v639 = vadd.f32 %v526, %v609
        %v640 = vadd.f32 %v527, %v611
        %v641 = vadd.f32 %v528, %v614
        %v642 = vadd.f32 %v529, %v616
        %v643 = vadd.f32 %v530, %v619
        %v644 = vadd.f32 %v531, %v621
        %v645 = vadd.f32 %v532, %v624
        %v646 = vadd.f32 %v533, %v626
        %v647 = vadd.f32 %v534, %v629
        %v648 = vadd.f32 %v535, %v631
        %649 = vst [vmem:[#allocation2] sm:$0xff] %v633
        %650 = vst [vmem:[#allocation2 + $0x8] sm:$0xff] %v634
        %651 = vst [vmem:[#allocation2 + $0x10] sm:$0xff] %v635
        %652 = vst [vmem:[#allocation2 + $0x18] sm:$0xff] %v636
        %653 = vst [vmem:[#allocation2 + $0x20] sm:$0xff] %v637
        %654 = vst [vmem:[#allocation2 + $0x28] sm:$0xff] %v638
        %655 = vst [vmem:[#allocation2 + $0x30] sm:$0xff] %v639
        %656 = vst [vmem:[#allocation2 + $0x38] sm:$0xff] %v640
        %657 = vst [vmem:[#allocation2 + $0x40] sm:$0xff] %v641
        %658 = vst [vmem:[#allocation2 + $0x48] sm:$0xff] %v642
        %659 = vst [vmem:[#allocation2 + $0x50] sm:$0xff] %v643
        %660 = vst [vmem:[#allocation2 + $0x58] sm:$0xff] %v644
        %661 = vst [vmem:[#allocation2 + $0x60] sm:$0xff] %v645
        %662 = vst [vmem:[#allocation2 + $0x68] sm:$0xff] %v646
        %663 = vst [vmem:[#allocation2 + $0x70] sm:$0xff] %v647
        %664 = vst [vmem:[#allocation2 + $0x78] sm:$0xff] %v648
        %p665 = scmp.eq.s32.totalorder %s33, 1
        // Predicated region
        $region77: #{tpu_custom_call.1} parent=51 // pred_check
          %p666 = pneg %p665
        $region78: #{tpu_custom_call.1} parent=51 // pred_check_branch
          %668 = sbr.rel (%p666) target = $region80
        $region79: #{tpu_custom_call.1} parent=51 // pred_region
          %s669 = sld [smem:[#allocation3]]
          %v670 = vld [vmem:[#allocation2] sm:$0xff]
          %v671 = vld [vmem:[#allocation2 + $0x8] sm:$0xff]
          %v672 = vld [vmem:[#allocation2 + $0x10] sm:$0xff]
          %v673 = vld [vmem:[#allocation2 + $0x18] sm:$0xff]
          %v674 = vld [vmem:[#allocation2 + $0x20] sm:$0xff]
          %v675 = vld [vmem:[#allocation2 + $0x28] sm:$0xff]
          %v676 = vld [vmem:[#allocation2 + $0x30] sm:$0xff]
          %v677 = vld [vmem:[#allocation2 + $0x38] sm:$0xff]
          %v678 = vld [vmem:[#allocation2 + $0x40] sm:$0xff]
          %v679 = vld [vmem:[#allocation2 + $0x48] sm:$0xff]
          %v680 = vld [vmem:[#allocation2 + $0x50] sm:$0xff]
          %v681 = vld [vmem:[#allocation2 + $0x58] sm:$0xff]
          %v682 = vld [vmem:[#allocation2 + $0x60] sm:$0xff]
          %v683 = vld [vmem:[#allocation2 + $0x68] sm:$0xff]
          %v684 = vld [vmem:[#allocation2 + $0x70] sm:$0xff]
          %v685 = vld [vmem:[#allocation2 + $0x78] sm:$0xff]
          %s686 = sadd.f32 %s669, 1.0
          %v687 = vld [vmem:[%s383] sm:$0xff]
          %v688 = vld [vmem:[%s383 + $0x8] sm:$0xff]
          %v689 = vld [vmem:[%s383 + $0x10] sm:$0xff]
          %v690 = vld [vmem:[%s383 + $0x18] sm:$0xff]
          %v691 = vld [vmem:[%s383 + $0x20] sm:$0xff]
          %v692 = vld [vmem:[%s383 + $0x28] sm:$0xff]
          %v693 = vld [vmem:[%s383 + $0x30] sm:$0xff]
          %v694 = vld [vmem:[%s383 + $0x38] sm:$0xff]
          %v695 = vld [vmem:[%s383 + $0x40] sm:$0xff]
          %v696 = vld [vmem:[%s383 + $0x48] sm:$0xff]
          %v697 = vld [vmem:[%s383 + $0x50] sm:$0xff]
          %v698 = vld [vmem:[%s383 + $0x58] sm:$0xff]
          %v699 = vld [vmem:[%s383 + $0x60] sm:$0xff]
          %v700 = vld [vmem:[%s383 + $0x68] sm:$0xff]
          %v701 = vld [vmem:[%s383 + $0x70] sm:$0xff]
          %v702 = vld [vmem:[%s383 + $0x78] sm:$0xff]
          %v703 = vstv %s686
          %v704 = vmul.f32 %v703, %v687
          %v705 = vmul.f32 %v703, %v688
          %v706 = vmul.f32 %v703, %v689
          %v707 = vmul.f32 %v703, %v690
          %v708 = vmul.f32 %v703, %v691
          %v709 = vmul.f32 %v703, %v692
          %v710 = vmul.f32 %v703, %v693
          %v711 = vmul.f32 %v703, %v694
          %v712 = vmul.f32 %v703, %v695
          %v713 = vmul.f32 %v703, %v696
          %v714 = vmul.f32 %v703, %v697
          %v715 = vmul.f32 %v703, %v698
          %v716 = vmul.f32 %v703, %v699
          %v717 = vmul.f32 %v703, %v700
          %v718 = vmul.f32 %v703, %v701
          %v719 = vmul.f32 %v703, %v702
          %v720 = vadd.f32 %v670, %v704
          %v721 = vadd.f32 %v671, %v705
          %v722 = vadd.f32 %v672, %v706
          %v723 = vadd.f32 %v673, %v707
          %v724 = vadd.f32 %v674, %v708
          %v725 = vadd.f32 %v675, %v709
          %v726 = vadd.f32 %v676, %v710
          %v727 = vadd.f32 %v677, %v711
          %v728 = vadd.f32 %v678, %v712
          %v729 = vadd.f32 %v679, %v713
          %v730 = vadd.f32 %v680, %v714
          %v731 = vadd.f32 %v681, %v715
          %v732 = vadd.f32 %v682, %v716
          %v733 = vadd.f32 %v683, %v717
          %v734 = vadd.f32 %v684, %v718
          %v735 = vadd.f32 %v685, %v719
          %v736 = vpack.c.bf16 %v721, %v720
          %v737 = vpack.c.bf16 %v723, %v722
          %v738 = vpack.c.bf16 %v725, %v724
          %v739 = vpack.c.bf16 %v727, %v726
          %v740 = vpack.c.bf16 %v729, %v728
          %v741 = vpack.c.bf16 %v731, %v730
          %v742 = vpack.c.bf16 %v733, %v732
          %v743 = vpack.c.bf16 %v735, %v734
          %v744 = vld [vmem:[#allocation10] sm:$0xf]
          %v745 = vld [vmem:[#allocation10 + $0x4] sm:$0xf]
          %v746 = vld [vmem:[#allocation10 + $0x8] sm:$0xf]
          %v747 = vld [vmem:[#allocation10 + $0xc] sm:$0xf]
          %v748 = vld [vmem:[#allocation10 + $0x10] sm:$0xf]
          %v749 = vld [vmem:[#allocation10 + $0x14] sm:$0xf]
          %v750 = vld [vmem:[#allocation10 + $0x18] sm:$0xf]
          %v751 = vld [vmem:[#allocation10 + $0x1c] sm:$0xf]
          %v752 = vld [vmem:[#allocation10 + $0x20] sm:$0xf]
          %v753 = vld [vmem:[#allocation10 + $0x24] sm:$0xf]
          %v754 = vld [vmem:[#allocation10 + $0x28] sm:$0xf]
          %v755 = vld [vmem:[#allocation10 + $0x2c] sm:$0xf]
          %v756 = vld [vmem:[#allocation10 + $0x30] sm:$0xf]
          %v757 = vld [vmem:[#allocation10 + $0x34] sm:$0xf]
          %v758 = vld [vmem:[#allocation10 + $0x38] sm:$0xf]
          %v759 = vld [vmem:[#allocation10 + $0x3c] sm:$0xf]
          %v760 = vld [vmem:[%s5] sm:$0x1]
          %v761 = vunpack.c.l.bf16 %v760
          %v762 = vperm.slane %v761, 0
          %v779 = vunpack.c.l.b16 %v744
          %v780 = vunpack.c.l.b16 %v745
          %v781 = vunpack.c.l.b16 %v746
          %v782 = vunpack.c.l.b16 %v747
          %v783 = vunpack.c.l.b16 %v748
          %v784 = vunpack.c.l.b16 %v749
          %v785 = vunpack.c.l.b16 %v750
          %v786 = vunpack.c.l.b16 %v751
          %v787 = vunpack.c.l.b16 %v752
          %v788 = vunpack.c.l.b16 %v753
          %v789 = vunpack.c.l.b16 %v754
          %v790 = vunpack.c.l.b16 %v755
          %v791 = vunpack.c.l.b16 %v756
          %v792 = vunpack.c.l.b16 %v757
          %v793 = vunpack.c.l.b16 %v758
          %v794 = vunpack.c.l.b16 %v759
          %v795 = vpack.c.b16 %v780, %v779
          %v796 = vpack.c.b16 %v782, %v781
          %v797 = vpack.c.b16 %v784, %v783
          %v798 = vpack.c.b16 %v786, %v785
          %v799 = vpack.c.b16 %v788, %v787
          %v800 = vpack.c.b16 %v790, %v789
          %v801 = vpack.c.b16 %v792, %v791
          %v802 = vpack.c.b16 %v794, %v793
          %811 = vmatpush.bf16.msra.mxu0 %v802
          %812 = vmatpush.bf16.msra.mxu0 %v801
          %813 = vmatpush.bf16.msra.mxu0 %v800
          %814 = vmatpush.bf16.msra.mxu0 %v799
          %815 = vmatpush.bf16.msra.mxu0 %v798
          %816 = vmatpush.bf16.msra.mxu0 %v797
          %817 = vmatpush.bf16.msra.mxu0 %v796
          %818 = vmatpush.bf16.msra.mxu0 %v795
          %819 = vmatmul.bf16.gmra.mxu0 %v736
          %v820 = vpop.f32.mrf.mxu0
          %v821 = vadd.f32 %v762, %v820
          %v822 = vpop.f32.mrf.mxu0
          %v823 = vadd.f32 %v762, %v822
          %824 = vmatmul.bf16.gmra.mxu0 %v737
          %v825 = vpop.f32.mrf.mxu0
          %v826 = vadd.f32 %v762, %v825
          %v827 = vpop.f32.mrf.mxu0
          %v828 = vadd.f32 %v762, %v827
          %829 = vmatmul.bf16.gmra.mxu0 %v738
          %v830 = vpop.f32.mrf.mxu0
          %v831 = vadd.f32 %v762, %v830
          %v832 = vpop.f32.mrf.mxu0
          %v833 = vadd.f32 %v762, %v832
          %834 = vmatmul.bf16.gmra.mxu0 %v739
          %v835 = vpop.f32.mrf.mxu0
          %v836 = vadd.f32 %v762, %v835
          %v837 = vpop.f32.mrf.mxu0
          %v838 = vadd.f32 %v762, %v837
          %839 = vmatmul.bf16.gmra.mxu0 %v740
          %v840 = vpop.f32.mrf.mxu0
          %v841 = vadd.f32 %v762, %v840
          %v842 = vpop.f32.mrf.mxu0
          %v843 = vadd.f32 %v762, %v842
          %844 = vmatmul.bf16.gmra.mxu0 %v741
          %v845 = vpop.f32.mrf.mxu0
          %v846 = vadd.f32 %v762, %v845
          %v847 = vpop.f32.mrf.mxu0
          %v848 = vadd.f32 %v762, %v847
          %849 = vmatmul.bf16.gmra.mxu0 %v742
          %v850 = vpop.f32.mrf.mxu0
          %v851 = vadd.f32 %v762, %v850
          %v852 = vpop.f32.mrf.mxu0
          %v853 = vadd.f32 %v762, %v852
          %854 = vmatmul.bf16.gmra.mxu0 %v743
          %v855 = vpop.f32.mrf.mxu0
          %v856 = vadd.f32 %v762, %v855
          %v857 = vpop.f32.mrf.mxu0
          %v858 = vadd.f32 %v762, %v857
          %859 = vdwg.mxu0
          %v860 = vmax.f32 %v821, 0.0
          %v861 = vmax.f32 %v823, 0.0
          %v862 = vmax.f32 %v826, 0.0
          %v863 = vmax.f32 %v828, 0.0
          %v864 = vmax.f32 %v831, 0.0
          %v865 = vmax.f32 %v833, 0.0
          %v866 = vmax.f32 %v836, 0.0
          %v867 = vmax.f32 %v838, 0.0
          %v868 = vmax.f32 %v841, 0.0
          %v869 = vmax.f32 %v843, 0.0
          %v870 = vmax.f32 %v846, 0.0
          %v871 = vmax.f32 %v848, 0.0
          %v872 = vmax.f32 %v851, 0.0
          %v873 = vmax.f32 %v853, 0.0
          %v874 = vmax.f32 %v856, 0.0
          %v875 = vmax.f32 %v858, 0.0
          %v876 = vpack.c.bf16 %v861, %v860
          %v877 = vpack.c.bf16 %v863, %v862
          %v878 = vpack.c.bf16 %v865, %v864
          %v879 = vpack.c.bf16 %v867, %v866
          %v880 = vpack.c.bf16 %v869, %v868
          %v881 = vpack.c.bf16 %v871, %v870
          %v882 = vpack.c.bf16 %v873, %v872
          %v883 = vpack.c.bf16 %v875, %v874
          %v884 = vld [vmem:[#allocation11] sm:$0xf]
          %v885 = vld [vmem:[#allocation11 + $0x4] sm:$0xf]
          %v886 = vld [vmem:[#allocation11 + $0x8] sm:$0xf]
          %v887 = vld [vmem:[#allocation11 + $0xc] sm:$0xf]
          %v888 = vld [vmem:[#allocation11 + $0x10] sm:$0xf]
          %v889 = vld [vmem:[#allocation11 + $0x14] sm:$0xf]
          %v890 = vld [vmem:[#allocation11 + $0x18] sm:$0xf]
          %v891 = vld [vmem:[#allocation11 + $0x1c] sm:$0xf]
          %v892 = vld [vmem:[#allocation11 + $0x20] sm:$0xf]
          %v893 = vld [vmem:[#allocation11 + $0x24] sm:$0xf]
          %v894 = vld [vmem:[#allocation11 + $0x28] sm:$0xf]
          %v895 = vld [vmem:[#allocation11 + $0x2c] sm:$0xf]
          %v896 = vld [vmem:[#allocation11 + $0x30] sm:$0xf]
          %v897 = vld [vmem:[#allocation11 + $0x34] sm:$0xf]
          %v898 = vld [vmem:[#allocation11 + $0x38] sm:$0xf]
          %v899 = vld [vmem:[#allocation11 + $0x3c] sm:$0xf]
          %v900 = vld [vmem:[%s7] sm:$0x1]
          %v901 = vunpack.c.l.bf16 %v900
          %v902 = vperm.slane %v901, 0
          %v919 = vunpack.c.l.b16 %v884
          %v920 = vunpack.c.l.b16 %v885
          %v921 = vunpack.c.l.b16 %v886
          %v922 = vunpack.c.l.b16 %v887
          %v923 = vunpack.c.l.b16 %v888
          %v924 = vunpack.c.l.b16 %v889
          %v925 = vunpack.c.l.b16 %v890
          %v926 = vunpack.c.l.b16 %v891
          %v927 = vunpack.c.l.b16 %v892
          %v928 = vunpack.c.l.b16 %v893
          %v929 = vunpack.c.l.b16 %v894
          %v930 = vunpack.c.l.b16 %v895
          %v931 = vunpack.c.l.b16 %v896
          %v932 = vunpack.c.l.b16 %v897
          %v933 = vunpack.c.l.b16 %v898
          %v934 = vunpack.c.l.b16 %v899
          %v935 = vpack.c.b16 %v920, %v919
          %v936 = vpack.c.b16 %v922, %v921
          %v937 = vpack.c.b16 %v924, %v923
          %v938 = vpack.c.b16 %v926, %v925
          %v939 = vpack.c.b16 %v928, %v927
          %v940 = vpack.c.b16 %v930, %v929
          %v941 = vpack.c.b16 %v932, %v931
          %v942 = vpack.c.b16 %v934, %v933
          %951 = vmatpush.bf16.msra.mxu0 %v942
          %952 = vmatpush.bf16.msra.mxu0 %v941
          %953 = vmatpush.bf16.msra.mxu0 %v940
          %954 = vmatpush.bf16.msra.mxu0 %v939
          %955 = vmatpush.bf16.msra.mxu0 %v938
          %956 = vmatpush.bf16.msra.mxu0 %v937
          %957 = vmatpush.bf16.msra.mxu0 %v936
          %958 = vmatpush.bf16.msra.mxu0 %v935
          %959 = vmatmul.bf16.gmra.mxu0 %v876
          %v960 = vpop.f32.mrf.mxu0
          %v961 = vadd.f32 %v902, %v960
          %v962 = vpop.f32.mrf.mxu0
          %v963 = vadd.f32 %v902, %v962
          %964 = vmatmul.bf16.gmra.mxu0 %v877
          %v965 = vpop.f32.mrf.mxu0
          %v966 = vadd.f32 %v902, %v965
          %v967 = vpop.f32.mrf.mxu0
          %v968 = vadd.f32 %v902, %v967
          %969 = vmatmul.bf16.gmra.mxu0 %v878
          %v970 = vpop.f32.mrf.mxu0
          %v971 = vadd.f32 %v902, %v970
          %v972 = vpop.f32.mrf.mxu0
          %v973 = vadd.f32 %v902, %v972
          %974 = vmatmul.bf16.gmra.mxu0 %v879
          %v975 = vpop.f32.mrf.mxu0
          %v976 = vadd.f32 %v902, %v975
          %v977 = vpop.f32.mrf.mxu0
          %v978 = vadd.f32 %v902, %v977
          %979 = vmatmul.bf16.gmra.mxu0 %v880
          %v980 = vpop.f32.mrf.mxu0
          %v981 = vadd.f32 %v902, %v980
          %v982 = vpop.f32.mrf.mxu0
          %v983 = vadd.f32 %v902, %v982
          %984 = vmatmul.bf16.gmra.mxu0 %v881
          %v985 = vpop.f32.mrf.mxu0
          %v986 = vadd.f32 %v902, %v985
          %v987 = vpop.f32.mrf.mxu0
          %v988 = vadd.f32 %v902, %v987
          %989 = vmatmul.bf16.gmra.mxu0 %v882
          %v990 = vpop.f32.mrf.mxu0
          %v991 = vadd.f32 %v902, %v990
          %v992 = vpop.f32.mrf.mxu0
          %v993 = vadd.f32 %v902, %v992
          %994 = vmatmul.bf16.gmra.mxu0 %v883
          %v995 = vpop.f32.mrf.mxu0
          %v996 = vadd.f32 %v902, %v995
          %v997 = vpop.f32.mrf.mxu0
          %v998 = vadd.f32 %v902, %v997
          %999 = vdwg.mxu0
          %1000 = vst [vmem:[%s431] sm:$0xff] %v961
          %1001 = vst [vmem:[%s431 + $0x8] sm:$0xff] %v963
          %1002 = vst [vmem:[%s431 + $0x10] sm:$0xff] %v966
          %1003 = vst [vmem:[%s431 + $0x18] sm:$0xff] %v968
          %1004 = vst [vmem:[%s431 + $0x20] sm:$0xff] %v971
          %1005 = vst [vmem:[%s431 + $0x28] sm:$0xff] %v973
          %1006 = vst [vmem:[%s431 + $0x30] sm:$0xff] %v976
          %1007 = vst [vmem:[%s431 + $0x38] sm:$0xff] %v978
          %1008 = vst [vmem:[%s431 + $0x40] sm:$0xff] %v981
          %1009 = vst [vmem:[%s431 + $0x48] sm:$0xff] %v983
          %1010 = vst [vmem:[%s431 + $0x50] sm:$0xff] %v986
          %1011 = vst [vmem:[%s431 + $0x58] sm:$0xff] %v988
          %1012 = vst [vmem:[%s431 + $0x60] sm:$0xff] %v991
          %1013 = vst [vmem:[%s431 + $0x68] sm:$0xff] %v993
          %1014 = vst [vmem:[%s431 + $0x70] sm:$0xff] %v996
          %1015 = vst [vmem:[%s431 + $0x78] sm:$0xff] %v998
        $region80: #{tpu_custom_call.1} parent=51 // pred_fallthru
          _
        %s1016 = sand.u32 %s228, 1
        %s1017 = scalar_lea.sflag [#allocation6], %s1016
        %s1018 = sand.u32 %s228, 1
        %s1019 = smul.addr %s1018, 128
        %s1020 = scalar_lea.vmem [#allocation13], %s1019
        // Predicated region
        $region81: #{tpu_custom_call.1} parent=51 // pred_check
          %p1021 = pneg %p238
        $region82: #{tpu_custom_call.1} parent=51 // pred_check_branch
          %1023 = sbr.rel (%p1021) target = $region84
        $region83: #{tpu_custom_call.1} parent=51 // pred_region
          %s1024 = smul.u32 16, %s32
          %1026 = vsyncadd %s1017, 0
          %s1027 = smul.addr %s1024, 8
          %s1028 = scalar_lea.hbm %s8, %s1027
          %s1029 = sshll.u32 %s1020, 4
          %s1030 = int_to_ptr.vmem [resolvable:$true] %s1029
          %s1031 = sshll.u32 %s1028, 4
          %s1032 = int_to_ptr.hbm [resolvable:$true] %s1031
          %1037 = dma.vmem_to_hbm [thread:$0]  %s1030, 2048, %s1032, %s1017, 128, 128, 8
        $region84: #{tpu_custom_call.1} parent=51 // pred_fallthru
          _
      $region52: #{tpu_custom_call.1} parent=5 // pred_fallthru
        _
      %p1038 = scmp.le.s32.totalorder 2, %s23
      // Predicated region
      $region85: #{tpu_custom_call.1} parent=5 // pred_check
        %p1039 = pneg %p1038
      $region86: #{tpu_custom_call.1} parent=5 // pred_check_branch
        %1041 = sbr.rel (%p1039) target = $region88
      $region87: #{tpu_custom_call.1} parent=5 // pred_region
        %s1042 = ssub.s32 %s23, 2
        // Predicated region
        $region89: #{tpu_custom_call.1} parent=87 // pred_check
          %p1043 = pneg %p244
        $region90: #{tpu_custom_call.1} parent=87 // pred_check_branch
          %1045 = sbr.rel (%p1043) target = $region92
        $region91: #{tpu_custom_call.1} parent=87 // pred_region
          %s1046 = sand.u32 %s229, 1
          %s1047 = scalar_lea.sflag [#allocation6], %s1046
          %s1048 = sand.u32 %s229, 1
          %s1049 = smul.addr %s1048, 128
          %s1050 = scalar_lea.vmem [#allocation13], %s1049
          %1052 = dma.done %s1047, 2048
        $region92: #{tpu_custom_call.1} parent=87 // pred_fallthru
          _
      $region88: #{tpu_custom_call.1} parent=5 // pred_fallthru
        _
    $region6: #{tpu_custom_call.1} parent=1 // loop_footer
      %s27 = sadd.s32 1, %s23
    $region7: #{tpu_custom_call.1} parent=1 // loop_footer_branch
      %22 = sbr.rel target = $region3
    $region8: #{tpu_custom_call.1} parent=1 // loop_exit
      _
    %1053 = vsyncpa [#allocation5], 1
    %s1054 = scalar_lea.sflag [#allocation5], 1
    %1055 = vsyncpa %s1054, 1
    %1056 = vsyncpa [#allocation8], 1
    %1057 = vsyncpa [#allocation12], 1
    %1058 = vsyncpa [#allocation6], 1
    %s1059 = scalar_lea.sflag [#allocation6], 1
    %1060 = vsyncpa %s1059, 1

</llo_original>
